<compile_context>
chip_gen: v7x
topology: tpu7x:2x2x1
jax: 0.10.0
libtpu: 0.0.40
codegen_flags: <defaults>
</compile_context>

<pallas_src>
import functools

import jax
import jax.numpy as jnp
from jax.experimental import pallas as pl
from jax.experimental.pallas import tpu as pltpu

INPUT_DIM = 2      # MountainCar-v0 observation_space.shape[0]
OUTPUT_DIM = 3     # MountainCar-v0 action_space.n
HIDDEN_DIM = 128

LANE = 128
SUBLANE = 8

MAX_TB = 2048      # batch-tile cap: VMEM-safe on v5e (16 MiB scoped) / v6e / v7x (64 MiB)
MIN_SPLIT_B = 256  # above this batch size force >=2 grid steps (feeds both v7x TCs)


def _round_up(n, m):
    return ((n + m - 1) // m) * m


HID_PAD = _round_up(HIDDEN_DIM, LANE)       # 128
OUT_PAD = _round_up(OUTPUT_DIM, SUBLANE)    # 8 (narrow output; == full array last dim)


def _qnet_kernel(x_ref, w1_ref, b1_ref, w2_ref, b2_ref, w3_ref, b3_ref, o_ref,
                 *, input_dim):
    """One batch tile of the fused 3-layer MLP.

    x_ref : [TB, INPUT_DIM]       f32  (no feature padding)
    w1_ref: [INPUT_DIM, HID_PAD]  f32     b1_ref: [1, HID_PAD]  f32
    w2_ref: [HID_PAD, HID_PAD]    bf16    b2_ref: [1, HID_PAD]  f32
    w3_ref: [HID_PAD, OUT_PAD]    bf16    b3_ref: [1, OUT_PAD]  f32
    o_ref : [TB, OUT_PAD]         f32
    """
    # ---- Layer 1 on the VPU: reduction depth is only `input_dim` (=2), so an MXU
    #      matmul would be ~98% multiplies-by-zero.  Two lane-broadcast FMAs.
    acc = b1_ref[...]                                       # (1, HID) broadcasts up
    for j in range(input_dim):                              # static unroll
        acc = acc + x_ref[:, j:j + 1] * w1_ref[j:j + 1, :]  # (TB,1)*(1,HID)
    h1 = jnp.maximum(acc, 0.0).astype(jnp.bfloat16)

    # ---- Layers 2/3 on the MXU: bf16 operands, f32 accumulation, f32 bias/ReLU.
    h2 = jnp.dot(h1, w2_ref[...], preferred_element_type=jnp.float32) + b2_ref[...]
    h2 = jnp.maximum(h2, 0.0).astype(jnp.bfloat16)
    # w3 is pre-sliced to OUT_PAD (=8) columns: the MXU only produces the columns we
    # keep and the f32 writeback is 16x smaller than a 128-lane-padded output.
    o_ref[...] = (jnp.dot(h2, w3_ref[...], preferred_element_type=jnp.float32)
                  + b3_ref[...])


def prepare_params(params):
    """One-time padding / casting of the raw params for the kernel (hoisted out of
    the hot forward path).  Raw weights are [in_features, out_features] (PyTorch W.T),
    biases are [out_features]."""
    w1, b1, w2, b2, w3, b3 = params
    w1_p = w1.astype(jnp.float32)                                   # (2, 128) f32
    b1_p = b1.reshape(1, HIDDEN_DIM).astype(jnp.float32)            # (1, 128) f32
    w2_p = w2.astype(jnp.bfloat16)                                  # (128, 128) bf16
    b2_p = b2.reshape(1, HIDDEN_DIM).astype(jnp.float32)            # (1, 128) f32
    w3_p = (jnp.zeros((HID_PAD, OUT_PAD), jnp.float32)
            .at[:HIDDEN_DIM, :OUTPUT_DIM].set(w3)
            .astype(jnp.bfloat16))                                  # (128, 8) bf16
    b3_p = jnp.zeros((1, OUT_PAD), jnp.float32).at[:, :OUTPUT_DIM].set(b3)
    return (w1_p, b1_p, w2_p, b2_p, w3_p, b3_p)


@jax.jit
def qnetwork_forward(x, prepped_params):
    """x: [B, INPUT_DIM] -> [B, OUTPUT_DIM] float32 Q-values."""
    w1_p, b1_p, w2_p, b2_p, w3_p, b3_p = prepped_params
    B = x.shape[0]

    # Batch tiling: one tile for small (inference-style) batches; for larger batches
    # always >=2 grid steps (so v7x's 2 TensorCores both get work), capped at MAX_TB.
    if B <= MIN_SPLIT_B:
        TB = _round_up(max(B, 1), SUBLANE)
    else:
        TB = min(MAX_TB, _round_up((B + 1) // 2, SUBLANE))
    Bp = _round_up(B, TB)

    # Only batch-axis padding remains in the hot path (skipped when already aligned).
    x_f32 = x.astype(jnp.float32)
    if Bp == B:
        x_p = x_f32
    else:
        x_p = jnp.zeros((Bp, INPUT_DIM), jnp.float32).at[:B, :].set(x_f32)

    out_p = pl.pallas_call(
        functools.partial(_qnet_kernel, input_dim=INPUT_DIM),
        out_shape=jax.ShapeDtypeStruct((Bp, OUT_PAD), jnp.float32),
        grid_spec=pltpu.PrefetchScalarGridSpec(
            num_scalar_prefetch=0,
            grid=(Bp // TB,),
            in_specs=[
                pl.BlockSpec((TB, INPUT_DIM), lambda i: (i, 0)),        # streamed x
                pl.BlockSpec((INPUT_DIM, HID_PAD), lambda i: (0, 0)),   # resident weights
                pl.BlockSpec((1, HID_PAD), lambda i: (0, 0)),
                pl.BlockSpec((HID_PAD, HID_PAD), lambda i: (0, 0)),
                pl.BlockSpec((1, HID_PAD), lambda i: (0, 0)),
                pl.BlockSpec((HID_PAD, OUT_PAD), lambda i: (0, 0)),
                pl.BlockSpec((1, OUT_PAD), lambda i: (0, 0)),
            ],
            out_specs=pl.BlockSpec((TB, OUT_PAD), lambda i: (i, 0)),    # streamed out (8 cols)
        ),
        compiler_params=pltpu.CompilerParams(
            dimension_semantics=("parallel",),   # shards grid steps across 2 TCs on v7x
        ),
    )(x_p, w1_p, b1_p, w2_p, b2_p, w3_p, b3_p)

    # Padded batch rows carry relu(b1)-propagated garbage; slice them (and the
    # 5 padded output columns) off here.
    return out_p[:B, :OUTPUT_DIM]


def init_params(key, input_dim=INPUT_DIM, hidden_dim=HIDDEN_DIM, output_dim=OUTPUT_DIM):
    """Mimics PyTorch Linear init U(-1/sqrt(fan_in), 1/sqrt(fan_in)).
    Weights stored as [in_features, out_features] (transposed vs. PyTorch)."""
    def layer(k, fan_in, fan_out):
        kw, kb = jax.random.split(k)
        bound = 1.0 / jnp.sqrt(jnp.float32(fan_in))
        w = jax.random.uniform(kw, (fan_in, fan_out), jnp.float32, -bound, bound)
        b = jax.random.uniform(kb, (fan_out,), jnp.float32, -bound, bound)
        return w, b

    k1, k2, k3 = jax.random.split(key, 3)
    w1, b1 = layer(k1, input_dim, hidden_dim)
    w2, b2 = layer(k2, hidden_dim, hidden_dim)
    w3, b3 = layer(k3, hidden_dim, output_dim)
    return (w1, b1, w2, b2, w3, b3)


def _reference_forward(x, params):
    """Pure-f32 reference matching the PyTorch module."""
    w1, b1, w2, b2, w3, b3 = params
    h1 = jnp.maximum(x @ w1 + b1, 0.0)
    h2 = jnp.maximum(h1 @ w2 + b2, 0.0)
    return h2 @ w3 + b3


if __name__ == "__main__":
    key = jax.random.PRNGKey(0)
    k_params, k_x1, k_x2 = jax.random.split(key, 3)

    params = init_params(k_params)
    prepped = prepare_params(params)   # one-time param prep (out of the hot path)

    # Small inference-style batch (single tile, grid=1).
    x_small = jax.random.normal(k_x1, (2, INPUT_DIM), dtype=jnp.float32)
    out_small = jax.block_until_ready(qnetwork_forward(x_small, prepped))
    ref_small = _reference_forward(x_small, params)
    assert out_small.shape == (2, OUTPUT_DIM), out_small.shape
    # Tolerance accounts for bf16 weights/activations on layers 2-3 (f32 accum).
    assert jnp.allclose(out_small, ref_small, atol=2e-2, rtol=2e-2), (out_small, ref_small)

    # Replay-style batch exercising the multi-step batch grid (TB=304, grid=2, padded rows).
    x_big = jax.random.normal(k_x2, (600, INPUT_DIM), dtype=jnp.float32)
    out_big = jax.block_until_ready(qnetwork_forward(x_big, prepped))
    ref_big = _reference_forward(x_big, params)
    assert out_big.shape == (600, OUTPUT_DIM), out_big.shape
    assert jnp.allclose(out_big, ref_big, atol=2e-2, rtol=2e-2), (
        float(jnp.max(jnp.abs(out_big - ref_big))))

    print("KERNEL_OK")
</pallas_src>

<mosaic_0001>
module attributes {stable_mosaic.version = 11 : i64} {
  func.func @_qnet_kernel(%arg0: i32, %arg1: memref<8x2xf32, #tpu.memory_space<vmem>>, %arg2: memref<2x128xf32, #tpu.memory_space<vmem>>, %arg3: memref<1x128xf32, #tpu.memory_space<vmem>>, %arg4: memref<128x128xbf16, #tpu.memory_space<vmem>>, %arg5: memref<1x128xf32, #tpu.memory_space<vmem>>, %arg6: memref<128x8xbf16, #tpu.memory_space<vmem>>, %arg7: memref<1x8xf32, #tpu.memory_space<vmem>>, %arg8: memref<8x8xf32, #tpu.memory_space<vmem>>) attributes {dimension_semantics = [#tpu.dimension_semantics<parallel>], iteration_bounds = array<i64: 1>, scalar_prefetch = 0 : i64, scratch_operands = 0 : i64, tpu.core_type = #tpu.core_type<tc>, window_params = [{transform_indices = @transform_0, window_bounds = array<i64: 8, 2>}, {pipeline_mode = #tpu.pipeline_mode<synchronous>, transform_indices = @transform_1, window_bounds = array<i64: 2, 128>}, {pipeline_mode = #tpu.pipeline_mode<synchronous>, transform_indices = @transform_2, window_bounds = array<i64: 1, 128>}, {pipeline_mode = #tpu.pipeline_mode<synchronous>, transform_indices = @transform_3, window_bounds = array<i64: 128, 128>}, {pipeline_mode = #tpu.pipeline_mode<synchronous>, transform_indices = @transform_4, window_bounds = array<i64: 1, 128>}, {pipeline_mode = #tpu.pipeline_mode<synchronous>, transform_indices = @transform_5, window_bounds = array<i64: 128, 8>}, {pipeline_mode = #tpu.pipeline_mode<synchronous>, transform_indices = @transform_6, window_bounds = array<i64: 1, 8>}, {transform_indices = @transform_7, window_bounds = array<i64: 8, 8>}]} {
    %c0 = arith.constant 0 : index
    %c0_0 = arith.constant 0 : index
    %0 = vector.load %arg3[%c0, %c0_0] : memref<1x128xf32, #tpu.memory_space<vmem>>, vector<1x128xf32>
    %c0_1 = arith.constant 0 : index
    %c0_2 = arith.constant 0 : index
    %1 = vector.load %arg1[%c0_1, %c0_2] : memref<8x2xf32, #tpu.memory_space<vmem>>, vector<8x1xf32>
    %c0_3 = arith.constant 0 : index
    %c0_4 = arith.constant 0 : index
    %2 = vector.load %arg2[%c0_3, %c0_4] : memref<2x128xf32, #tpu.memory_space<vmem>>, vector<1x128xf32>
    %3 = vector.broadcast %1 : vector<8x1xf32> to vector<8x128xf32>
    %4 = vector.broadcast %2 : vector<1x128xf32> to vector<8x128xf32>
    %5 = arith.mulf %3, %4 : vector<8x128xf32>
    %6 = vector.broadcast %0 : vector<1x128xf32> to vector<8x128xf32>
    %7 = arith.addf %6, %5 : vector<8x128xf32>
    %c0_5 = arith.constant 0 : index
    %c1 = arith.constant 1 : index
    %8 = vector.load %arg1[%c0_5, %c1] : memref<8x2xf32, #tpu.memory_space<vmem>>, vector<8x1xf32>
    %c1_6 = arith.constant 1 : index
    %c0_7 = arith.constant 0 : index
    %9 = vector.load %arg2[%c1_6, %c0_7] : memref<2x128xf32, #tpu.memory_space<vmem>>, vector<1x128xf32>
    %10 = vector.broadcast %8 : vector<8x1xf32> to vector<8x128xf32>
    %11 = vector.broadcast %9 : vector<1x128xf32> to vector<8x128xf32>
    %12 = arith.mulf %10, %11 : vector<8x128xf32>
    %13 = arith.addf %7, %12 : vector<8x128xf32>
    %cst = arith.constant 0.000000e+00 : f32
    %14 = vector.broadcast %cst : f32 to vector<8x128xf32>
    %15 = arith.maximumf %13, %14 : vector<8x128xf32>
    %16 = arith.truncf %15 : vector<8x128xf32> to vector<8x128xbf16>
    %c0_8 = arith.constant 0 : index
    %c0_9 = arith.constant 0 : index
    %17 = vector.load %arg4[%c0_8, %c0_9] : memref<128x128xbf16, #tpu.memory_space<vmem>>, vector<128x128xbf16>
    %cst_10 = arith.constant dense<0.000000e+00> : vector<8x128xf32>
    %18 = tpu.matmul %16, %17, %cst_10 {dimension_numbers = #tpu.dot_dimension_numbers<[1], [0], [0], [1], [0, 0, 1, 1], [], []>} : vector<8x128xbf16>, vector<128x128xbf16>, vector<8x128xf32> -> vector<8x128xf32>
    %c0_11 = arith.constant 0 : index
    %c0_12 = arith.constant 0 : index
    %19 = vector.load %arg5[%c0_11, %c0_12] : memref<1x128xf32, #tpu.memory_space<vmem>>, vector<1x128xf32>
    %20 = vector.broadcast %19 : vector<1x128xf32> to vector<8x128xf32>
    %21 = arith.addf %18, %20 : vector<8x128xf32>
    %cst_13 = arith.constant 0.000000e+00 : f32
    %22 = vector.broadcast %cst_13 : f32 to vector<8x128xf32>
    %23 = arith.maximumf %21, %22 : vector<8x128xf32>
    %24 = arith.truncf %23 : vector<8x128xf32> to vector<8x128xbf16>
    %c0_14 = arith.constant 0 : index
    %c0_15 = arith.constant 0 : index
    %25 = vector.load %arg6[%c0_14, %c0_15] : memref<128x8xbf16, #tpu.memory_space<vmem>>, vector<128x8xbf16>
    %cst_16 = arith.constant dense<0.000000e+00> : vector<8x8xf32>
    %26 = tpu.matmul %24, %25, %cst_16 {dimension_numbers = #tpu.dot_dimension_numbers<[1], [0], [0], [1], [0, 0, 1, 1], [], []>} : vector<8x128xbf16>, vector<128x8xbf16>, vector<8x8xf32> -> vector<8x8xf32>
    %c0_17 = arith.constant 0 : index
    %c0_18 = arith.constant 0 : index
    %27 = vector.load %arg7[%c0_17, %c0_18] : memref<1x8xf32, #tpu.memory_space<vmem>>, vector<1x8xf32>
    %28 = vector.broadcast %27 : vector<1x8xf32> to vector<8x8xf32>
    %29 = arith.addf %26, %28 : vector<8x8xf32>
    %c0_19 = arith.constant 0 : index
    %c0_20 = arith.constant 0 : index
    %30 = vector.load %arg8[%c0_19, %c0_20] : memref<8x8xf32, #tpu.memory_space<vmem>>, vector<8x8xf32>
    tpu.vector_store %arg8[%c0_19, %c0_20], %29 {strides = array<i32>} : memref<8x8xf32, #tpu.memory_space<vmem>>, vector<8x8xf32>,
    return
  }
  func.func @transform_0(%arg0: i32) -> (i32, i32) {
    %c0_i32 = arith.constant 0 : i32
    %c0_i32_0 = arith.constant 0 : i32
    return %arg0, %c0_i32 : i32, i32
  }
  func.func @transform_1(%arg0: i32) -> (i32, i32) {
    %c0_i32 = arith.constant 0 : i32
    %c0_i32_0 = arith.constant 0 : i32
    %c0_i32_1 = arith.constant 0 : i32
    return %c0_i32, %c0_i32_0 : i32, i32
  }
  func.func @transform_2(%arg0: i32) -> (i32, i32) {
    %c0_i32 = arith.constant 0 : i32
    %c0_i32_0 = arith.constant 0 : i32
    %c0_i32_1 = arith.constant 0 : i32
    return %c0_i32, %c0_i32_0 : i32, i32
  }
  func.func @transform_3(%arg0: i32) -> (i32, i32) {
    %c0_i32 = arith.constant 0 : i32
    %c0_i32_0 = arith.constant 0 : i32
    %c0_i32_1 = arith.constant 0 : i32
    return %c0_i32, %c0_i32_0 : i32, i32
  }
  func.func @transform_4(%arg0: i32) -> (i32, i32) {
    %c0_i32 = arith.constant 0 : i32
    %c0_i32_0 = arith.constant 0 : i32
    %c0_i32_1 = arith.constant 0 : i32
    return %c0_i32, %c0_i32_0 : i32, i32
  }
  func.func @transform_5(%arg0: i32) -> (i32, i32) {
    %c0_i32 = arith.constant 0 : i32
    %c0_i32_0 = arith.constant 0 : i32
    %c0_i32_1 = arith.constant 0 : i32
    return %c0_i32, %c0_i32_0 : i32, i32
  }
  func.func @transform_6(%arg0: i32) -> (i32, i32) {
    %c0_i32 = arith.constant 0 : i32
    %c0_i32_0 = arith.constant 0 : i32
    %c0_i32_1 = arith.constant 0 : i32
    return %c0_i32, %c0_i32_0 : i32, i32
  }
  func.func @transform_7(%arg0: i32) -> (i32, i32) {
    %c0_i32 = arith.constant 0 : i32
    %c0_i32_0 = arith.constant 0 : i32
    return %arg0, %c0_i32 : i32, i32
  }
}

</mosaic_0001>

<llo_original>
// kernel: qnetwork_forward.1
$region0: #{qnetwork_forward.1}
  #allocation0 [shape = 'u32[]', space=smem, size = 0x4, offset = 0x4, fixed_abs, tag = 'smem constant byte address 0x4 - core index']
  #allocation1 [shape = 'u32[144,128]{1,0:T(1,128)}', space=vmem, size = 0x12000, scoped, tag = 'internal scratch']
  %s0 = inlined_call_operand.vmem [shape: f32[8,2], index: 0, kind: input, shape index: {}]
  %s1 = inlined_call_operand.vmem [shape: f32[2,128], index: 1, kind: input, shape index: {}]
  %s2 = inlined_call_operand.vmem [shape: f32[1,128], index: 2, kind: input, shape index: {}]
  %s3 = inlined_call_operand.vmem [shape: bf16[128,128], index: 3, kind: input, shape index: {}]
  %s4 = inlined_call_operand.vmem [shape: f32[1,128], index: 4, kind: input, shape index: {}]
  %s5 = inlined_call_operand.vmem [shape: bf16[128,8], index: 5, kind: input, shape index: {}]
  %s6 = inlined_call_operand.vmem [shape: f32[1,8], index: 6, kind: input, shape index: {}]
  %s7 = inlined_call_operand.vmem [shape: f32[8,8], index: 7, kind: output, shape index: {}]
  %s8 = sld [smem:[#allocation0]]
  $region38: #{qnetwork_forward.1} parent=0
    _
  %s10 = ssub.s32 1, %s8
  %s11 = scalar_select 0, %s10, %s8
  // Predicated region
  $region2: #{qnetwork_forward.1} parent=0 // pred_check
    _
  $region3: #{qnetwork_forward.1} parent=0 // pred_check_branch
    %13 = sbr.rel (0) target = $region5
  $region4: #{qnetwork_forward.1} parent=0 // pred_region
    _
  $region5: #{qnetwork_forward.1} parent=0 // pred_fallthru
    _
  // Predicated region
  $region6: #{qnetwork_forward.1} parent=0 // pred_check
    _
  $region7: #{qnetwork_forward.1} parent=0 // pred_check_branch
    %15 = sbr.rel (0) target = $region9
  $region8: #{qnetwork_forward.1} parent=0 // pred_region
    _
  $region9: #{qnetwork_forward.1} parent=0 // pred_fallthru
    _
  // Predicated region
  $region10: #{qnetwork_forward.1} parent=0 // pred_check
    _
  $region11: #{qnetwork_forward.1} parent=0 // pred_check_branch
    %17 = sbr.rel (0) target = $region13
  $region12: #{qnetwork_forward.1} parent=0 // pred_region
    _
  $region13: #{qnetwork_forward.1} parent=0 // pred_fallthru
    _
  // Predicated region
  $region14: #{qnetwork_forward.1} parent=0 // pred_check
    _
  $region15: #{qnetwork_forward.1} parent=0 // pred_check_branch
    %19 = sbr.rel (0) target = $region17
  $region16: #{qnetwork_forward.1} parent=0 // pred_region
    _
  $region17: #{qnetwork_forward.1} parent=0 // pred_fallthru
    _
  // Predicated region
  $region18: #{qnetwork_forward.1} parent=0 // pred_check
    _
  $region19: #{qnetwork_forward.1} parent=0 // pred_check_branch
    %21 = sbr.rel (0) target = $region21
  $region20: #{qnetwork_forward.1} parent=0 // pred_region
    _
  $region21: #{qnetwork_forward.1} parent=0 // pred_fallthru
    _
  // Predicated region
  $region22: #{qnetwork_forward.1} parent=0 // pred_check
    _
  $region23: #{qnetwork_forward.1} parent=0 // pred_check_branch
    %23 = sbr.rel (0) target = $region25
  $region24: #{qnetwork_forward.1} parent=0 // pred_region
    _
  $region25: #{qnetwork_forward.1} parent=0 // pred_fallthru
    _
  // Predicated region
  $region26: #{qnetwork_forward.1} parent=0 // pred_check
    _
  $region27: #{qnetwork_forward.1} parent=0 // pred_check_branch
    %25 = sbr.rel (0) target = $region29
  $region28: #{qnetwork_forward.1} parent=0 // pred_region
    _
  $region29: #{qnetwork_forward.1} parent=0 // pred_fallthru
    _
  %v27 = vld [vmem:[%s2] sm:$0x1]
  %v28 = vld [vmem:[%s0] sm:$0xff]
  %v29 = vld [vmem:[%s1] sm:$0x1]
  %31 = vset.pattern.permute.xlu0 0
  %32 = vperm.xlu0 %31, %v28
  %v33 = vpop.permute.xlu0 %32
  %v35 = vlaneseq
  %v36 = vshrl.u32 %v35, 7
  %v37 = vsub.s32 0, %v36
  %v38 = vrot.slane %v29, %v37
  %v39 = vmul.f32 %v33, %v38
  %v41 = vlaneseq
  %v42 = vshrl.u32 %v41, 7
  %v43 = vsub.s32 0, %v42
  %v44 = vrot.slane %v27, %v43
  %v46 = vadd.f32 %v44, %v39
  %v47 = vld [vmem:[%s1 + $0x1] sm:$0x1]
  %48 = vset.pattern.permute.xlu0 1
  %49 = vperm.xlu0 %48, %v28
  %v50 = vpop.permute.xlu0 %49
  %v52 = vlaneseq
  %v53 = vshrl.u32 %v52, 7
  %v54 = vsub.s32 0, %v53
  %v55 = vrot.slane %v47, %v54
  %v56 = vmul.f32 %v50, %v55
  %v57 = vadd.f32 %v46, %v56
  %v58 = vmax.f32 %v57, 0.0
  %v59 = vpack.c.bf16 %v58, %v58
  %v60 = vld [vmem:[%s3] sm:$0xf]
  %v61 = vld [vmem:[%s3 + $0x4] sm:$0xf]
  %v62 = vld [vmem:[%s3 + $0x8] sm:$0xf]
  %v63 = vld [vmem:[%s3 + $0xc] sm:$0xf]
  %v64 = vld [vmem:[%s3 + $0x10] sm:$0xf]
  %v65 = vld [vmem:[%s3 + $0x14] sm:$0xf]
  %v66 = vld [vmem:[%s3 + $0x18] sm:$0xf]
  %v67 = vld [vmem:[%s3 + $0x1c] sm:$0xf]
  %v68 = vld [vmem:[%s3 + $0x20] sm:$0xf]
  %v69 = vld [vmem:[%s3 + $0x24] sm:$0xf]
  %v70 = vld [vmem:[%s3 + $0x28] sm:$0xf]
  %v71 = vld [vmem:[%s3 + $0x2c] sm:$0xf]
  %v72 = vld [vmem:[%s3 + $0x30] sm:$0xf]
  %v73 = vld [vmem:[%s3 + $0x34] sm:$0xf]
  %v74 = vld [vmem:[%s3 + $0x38] sm:$0xf]
  %v75 = vld [vmem:[%s3 + $0x3c] sm:$0xf]
  %v76 = vld [vmem:[%s4] sm:$0x1]
  %v78 = vlaneseq
  %v79 = vshrl.u32 %v78, 7
  %v80 = vsub.s32 0, %v79
  %v81 = vrot.slane %v76, %v80
  %v99 = vunpack.c.l.b16 %v60
  %v100 = vunpack.c.l.b16 %v61
  %v101 = vunpack.c.l.b16 %v62
  %v102 = vunpack.c.l.b16 %v63
  %v103 = vunpack.c.l.b16 %v64
  %v104 = vunpack.c.l.b16 %v65
  %v105 = vunpack.c.l.b16 %v66
  %v106 = vunpack.c.l.b16 %v67
  %v107 = vunpack.c.l.b16 %v68
  %v108 = vunpack.c.l.b16 %v69
  %v109 = vunpack.c.l.b16 %v70
  %v110 = vunpack.c.l.b16 %v71
  %v111 = vunpack.c.l.b16 %v72
  %v112 = vunpack.c.l.b16 %v73
  %v113 = vunpack.c.l.b16 %v74
  %v114 = vunpack.c.l.b16 %v75
  %v115 = vpack.c.b16 %v100, %v99
  %v116 = vpack.c.b16 %v102, %v101
  %v117 = vpack.c.b16 %v104, %v103
  %v118 = vpack.c.b16 %v106, %v105
  %v119 = vpack.c.b16 %v108, %v107
  %v120 = vpack.c.b16 %v110, %v109
  %v121 = vpack.c.b16 %v112, %v111
  %v122 = vpack.c.b16 %v114, %v113
  %131 = vmatprep.subr.bf16.mxu0 0
  %132 = vmatpush1.bf16.msra.mxu0 %v115
  %133 = vmatprep.subr.bf16.mxu0 0
  %134 = vmatpush1.bf16.msra.mxu0 %v116
  %135 = vmatprep.subr.bf16.mxu0 0
  %136 = vmatpush1.bf16.msra.mxu0 %v117
  %137 = vmatprep.subr.bf16.mxu0 0
  %138 = vmatpush1.bf16.msra.mxu0 %v118
  %139 = vmatprep.subr.bf16.mxu0 0
  %140 = vmatpush1.bf16.msra.mxu0 %v119
  %141 = vmatprep.subr.bf16.mxu0 0
  %142 = vmatpush1.bf16.msra.mxu0 %v120
  %143 = vmatprep.subr.bf16.mxu0 0
  %144 = vmatpush1.bf16.msra.mxu0 %v121
  %145 = vmatprep.subr.bf16.mxu0 0
  %146 = vmatpush1.bf16.msra.mxu0 %v122
  %147 = vmatprep.subr.bf16.mxu0 0
  %148 = vmatpush1.bf16.msra.mxu0 0
  %149 = vmatprep.subr.bf16.mxu0 0
  %150 = vmatpush1.bf16.msra.mxu0 0
  %151 = vmatprep.subr.bf16.mxu0 0
  %152 = vmatpush1.bf16.msra.mxu0 0
  %153 = vmatprep.subr.bf16.mxu0 0
  %154 = vmatpush1.bf16.msra.mxu0 0
  %155 = vmatprep.subr.bf16.mxu0 0
  %156 = vmatpush1.bf16.msra.mxu0 0
  %157 = vmatprep.subr.bf16.mxu0 0
  %158 = vmatpush1.bf16.msra.mxu0 0
  %159 = vmatprep.subr.bf16.mxu0 0
  %160 = vmatpush1.bf16.msra.mxu0 0
  %161 = vmatprep.subr.bf16.mxu0 0
  %162 = vmatpush1.bf16.msra.mxu0 0
  %163 = vmatprep.mubr.bf16.mxu0 0
  %164 = vmatmul.mubr.bf16.gmra.mrb[0].mxu0 %v59
  %v165 = vpop.f32.mrb[0].mxu0
  %v166 = vadd.f32 %v81, %v165
  %v167 = vpop.f32.mrb[0].mxu0
  %v168 = vpop.f32.mrb[0].mxu0
  %v169 = vpop.f32.mrb[0].mxu0
  %170 = vdwg.mxu0
  %v171 = vmax.f32 %v166, 0.0
  %v172 = vpack.c.bf16 %v171, %v171
  %v173 = vld [vmem:[%s5] sm:$0xf]
  %v174 = vld [vmem:[%s5 + $0x4] sm:$0xf]
  %v175 = vld [vmem:[%s5 + $0x8] sm:$0xf]
  %v176 = vld [vmem:[%s5 + $0xc] sm:$0xf]
  %v177 = vld [vmem:[%s5 + $0x10] sm:$0xf]
  %v178 = vld [vmem:[%s5 + $0x14] sm:$0xf]
  %v179 = vld [vmem:[%s5 + $0x18] sm:$0xf]
  %v180 = vld [vmem:[%s5 + $0x1c] sm:$0xf]
  %v181 = vld [vmem:[%s5 + $0x20] sm:$0xf]
  %v182 = vld [vmem:[%s5 + $0x24] sm:$0xf]
  %v183 = vld [vmem:[%s5 + $0x28] sm:$0xf]
  %v184 = vld [vmem:[%s5 + $0x2c] sm:$0xf]
  %v185 = vld [vmem:[%s5 + $0x30] sm:$0xf]
  %v186 = vld [vmem:[%s5 + $0x34] sm:$0xf]
  %v187 = vld [vmem:[%s5 + $0x38] sm:$0xf]
  %v188 = vld [vmem:[%s5 + $0x3c] sm:$0xf]
  %v189 = vld [vmem:[%s6] sm:$0x1]
  %v191 = vlaneseq
  %v192 = vshrl.u32 %v191, 7
  %v193 = vsub.s32 0, %v192
  %v194 = vrot.slane %v189, %v193
  %v212 = vunpack.c.l.b16 %v173
  %v213 = vunpack.c.l.b16 %v174
  %v214 = vunpack.c.l.b16 %v175
  %v215 = vunpack.c.l.b16 %v176
  %v216 = vunpack.c.l.b16 %v177
  %v217 = vunpack.c.l.b16 %v178
  %v218 = vunpack.c.l.b16 %v179
  %v219 = vunpack.c.l.b16 %v180
  %v220 = vunpack.c.l.b16 %v181
  %v221 = vunpack.c.l.b16 %v182
  %v222 = vunpack.c.l.b16 %v183
  %v223 = vunpack.c.l.b16 %v184
  %v224 = vunpack.c.l.b16 %v185
  %v225 = vunpack.c.l.b16 %v186
  %v226 = vunpack.c.l.b16 %v187
  %v227 = vunpack.c.l.b16 %v188
  %v228 = vpack.c.b16 %v213, %v212
  %v229 = vpack.c.b16 %v215, %v214
  %v230 = vpack.c.b16 %v217, %v216
  %v231 = vpack.c.b16 %v219, %v218
  %v232 = vpack.c.b16 %v221, %v220
  %v233 = vpack.c.b16 %v223, %v222
  %v234 = vpack.c.b16 %v225, %v224
  %v235 = vpack.c.b16 %v227, %v226
  %244 = vmatprep.subr.bf16.mxu0 0
  %245 = vmatpush1.bf16.msra.mxu0 %v228
  %246 = vmatprep.subr.bf16.mxu0 0
  %247 = vmatpush1.bf16.msra.mxu0 %v229
  %248 = vmatprep.subr.bf16.mxu0 0
  %249 = vmatpush1.bf16.msra.mxu0 %v230
  %250 = vmatprep.subr.bf16.mxu0 0
  %251 = vmatpush1.bf16.msra.mxu0 %v231
  %252 = vmatprep.subr.bf16.mxu0 0
  %253 = vmatpush1.bf16.msra.mxu0 %v232
  %254 = vmatprep.subr.bf16.mxu0 0
  %255 = vmatpush1.bf16.msra.mxu0 %v233
  %256 = vmatprep.subr.bf16.mxu0 0
  %257 = vmatpush1.bf16.msra.mxu0 %v234
  %258 = vmatprep.subr.bf16.mxu0 0
  %259 = vmatpush1.bf16.msra.mxu0 %v235
  %260 = vmatprep.subr.bf16.mxu0 0
  %261 = vmatpush1.bf16.msra.mxu0 0
  %262 = vmatprep.subr.bf16.mxu0 0
  %263 = vmatpush1.bf16.msra.mxu0 0
  %264 = vmatprep.subr.bf16.mxu0 0
  %265 = vmatpush1.bf16.msra.mxu0 0
  %266 = vmatprep.subr.bf16.mxu0 0
  %267 = vmatpush1.bf16.msra.mxu0 0
  %268 = vmatprep.subr.bf16.mxu0 0
  %269 = vmatpush1.bf16.msra.mxu0 0
  %270 = vmatprep.subr.bf16.mxu0 0
  %271 = vmatpush1.bf16.msra.mxu0 0
  %272 = vmatprep.subr.bf16.mxu0 0
  %273 = vmatpush1.bf16.msra.mxu0 0
  %274 = vmatprep.subr.bf16.mxu0 0
  %275 = vmatpush1.bf16.msra.mxu0 0
  %276 = vmatprep.mubr.bf16.mxu0 0
  %277 = vmatmul.mubr.bf16.gmra.mrb[0].mxu0 %v172
  %v278 = vpop.f32.mrb[0].mxu0
  %v279 = vadd.f32 %v194, %v278
  %v280 = vpop.f32.mrb[0].mxu0
  %v281 = vpop.f32.mrb[0].mxu0
  %v282 = vpop.f32.mrb[0].mxu0
  %283 = vdwg.mxu0
  %vm284 = vcmask 64512
  %285 = vst.msk [vmem:[%s7] sm:$0xff] %vm284, %v279
  // Predicated region
  $region30: #{qnetwork_forward.1} parent=0 // pred_check
    _
  $region31: #{qnetwork_forward.1} parent=0 // pred_check_branch
    %287 = sbr.rel (0) target = $region33
  $region32: #{qnetwork_forward.1} parent=0 // pred_region
    _
  $region33: #{qnetwork_forward.1} parent=0 // pred_fallthru
    _
  // Predicated region
  $region34: #{qnetwork_forward.1} parent=0 // pred_check
    _
  $region35: #{qnetwork_forward.1} parent=0 // pred_check_branch
    %289 = sbr.rel (0) target = $region37
  $region36: #{qnetwork_forward.1} parent=0 // pred_region
    _
  $region37: #{qnetwork_forward.1} parent=0 // pred_fallthru
    _

</llo_original>
